<compile_context>
chip_gen: v5e
topology: v5e:2x2
jax: 0.10.0
libtpu: 0.0.40
codegen_flags: <defaults>
</compile_context>

<pallas_src>
import functools

import jax
import jax.numpy as jnp
from jax.experimental import pallas as pl
from jax.experimental.pallas import tpu as pltpu

LOG_STD_MAX = 2.0
LOG_STD_MIN = -20.0


def actor_kernel(obs_ref, w1_ref, b1_ref, w2_ref, b2_ref, wh_ref, bh_ref,
                 eps_ref, out_ref):
    # ---- layer 1: Linear(3, 64) + ReLU -----------------------------------
    # Contracting dim is only 3, so an MXU matmul would be pure push/pop
    # overhead (and need K-padding/masking). Three broadcasted multiply-adds
    # on the VPU are exact, layout-safe and essentially free.
    x = obs_ref[...].astype(jnp.float32)            # [3, TB]
    w1 = w1_ref[...]                                # [64, 3] f32
    h1 = (w1[:, 0:1] * x[0:1, :]
          + w1[:, 1:2] * x[1:2, :]
          + w1[:, 2:3] * x[2:3, :]
          + b1_ref[...])                            # [64, TB]
    h1 = jnp.maximum(h1, 0.0)

    # ---- layer 2: Linear(64, 64) + ReLU (MXU, bf16 operands, f32 acc) ----
    h2 = jnp.dot(w2_ref[...], h1.astype(w2_ref.dtype),
                 preferred_element_type=jnp.float32) + b2_ref[...]
    h2 = jnp.maximum(h2, 0.0)                       # [64, TB]

    # ---- fused mu / log_std heads: [2, 64] @ [64, TB] -> [2, TB] ----------
    heads = jnp.dot(wh_ref[...], h2.astype(wh_ref.dtype),
                    preferred_element_type=jnp.float32) + bh_ref[...]
    mu = heads[0:1, :]                              # [1, TB]
    log_std = jnp.clip(heads[1:2, :], LOG_STD_MIN, LOG_STD_MAX)

    # ---- reparameterized Normal(mu, exp(log_std)).sample(), tanh * 2 ------
    gaussian = mu + jnp.exp(log_std) * eps_ref[...]
    out_ref[...] = jnp.tanh(gaussian) * 2.0         # lane-dense [1, TB] store


def _round_up(x, m):
    return ((x + m - 1) // m) * m


def prepare_params(params, compute_dtype=jnp.bfloat16):
    """One-time prep (hoisted out of the forward pass): transpose weights to the
    (out_features, in_features) layout, fuse the mu/log_std heads into one
    [2, 64] matmul, cast MXU operands to bf16, reshape biases to columns."""
    w1, b1, w2, b2, wmu, bmu, wls, bls = params
    w1_t = jnp.asarray(w1, jnp.float32).T                        # [64, 3]  (VPU layer)
    b1_c = jnp.asarray(b1, jnp.float32).reshape(64, 1)
    w2_t = jnp.asarray(w2, jnp.float32).T.astype(compute_dtype)  # [64, 64]
    b2_c = jnp.asarray(b2, jnp.float32).reshape(64, 1)
    wh = jnp.concatenate([jnp.asarray(wmu).T, jnp.asarray(wls).T],
                         axis=0).astype(compute_dtype)           # [2, 64]
    bh = jnp.concatenate([jnp.asarray(bmu), jnp.asarray(bls)]
                         ).astype(jnp.float32).reshape(2, 1)     # [2, 1]
    return (w1_t, b1_c, w2_t, b2_c, wh, bh)


@functools.partial(jax.jit, static_argnames=("block_b",))
def simple_actor_forward(obs, prepped, eps, block_b=1024):
    """obs: [B, 3] float; eps: [B, 1] (or [B]) standard-normal noise. -> [B, 1]."""
    w1_t, b1, w2_t, b2, wh, bh = prepped
    B = obs.shape[0]
    assert block_b % 128 == 0
    tb = min(block_b, _round_up(B, 128))        # batch tile (lane axis), mult of 128
    b_pad = _round_up(B, tb)
    n_blocks = b_pad // tb

    # Transpose to lane-dense layout; bf16 stream halves the only real HBM read.
    obs_t = obs.T.astype(jnp.bfloat16)                           # [3, B]
    eps_t = jnp.asarray(eps, jnp.float32).reshape(1, B)          # [1, B]
    if b_pad != B:                                               # tail padding
        obs_t = jnp.pad(obs_t, ((0, 0), (0, b_pad - B)))
        eps_t = jnp.pad(eps_t, ((0, 0), (0, b_pad - B)))

    flops = b_pad * (2 * 3 * 64 + 2 * 64 * 64 + 2 * 64 * 2)
    bytes_accessed = 3 * b_pad * 2 + b_pad * 4 + b_pad * 4 + 10_000

    out_t = pl.pallas_call(
        actor_kernel,
        out_shape=jax.ShapeDtypeStruct((1, b_pad), jnp.float32),
        grid=(n_blocks,),
        in_specs=[
            pl.BlockSpec((3, tb), lambda i: (0, i)),     # obs^T stream
            pl.BlockSpec((64, 3), lambda i: (0, 0)),     # resident weights/biases
            pl.BlockSpec((64, 1), lambda i: (0, 0)),
            pl.BlockSpec((64, 64), lambda i: (0, 0)),
            pl.BlockSpec((64, 1), lambda i: (0, 0)),
            pl.BlockSpec((2, 64), lambda i: (0, 0)),
            pl.BlockSpec((2, 1), lambda i: (0, 0)),
            pl.BlockSpec((1, tb), lambda i: (0, i)),     # eps stream
        ],
        out_specs=pl.BlockSpec((1, tb), lambda i: (0, i)),
        compiler_params=pltpu.CompilerParams(
            dimension_semantics=("parallel",),           # megacore on v7x
            vmem_limit_bytes=32 * 1024 * 1024,
        ),
        cost_estimate=pl.CostEstimate(
            flops=flops, transcendentals=2 * b_pad, bytes_accessed=bytes_accessed),
    )(obs_t, w1_t, b1, w2_t, b2, wh, bh, eps_t)

    return out_t[:, :B].T                                # back to [B, 1]


def reference_forward(obs, params, eps):
    """Pure-JAX f32 reference matching the PyTorch module semantics."""
    w1, b1, w2, b2, wmu, bmu, wls, bls = params
    h1 = jnp.maximum(obs @ w1 + b1, 0.0)
    h2 = jnp.maximum(h1 @ w2 + b2, 0.0)
    mu = h2 @ wmu + bmu
    log_std = jnp.clip(h2 @ wls + bls, LOG_STD_MIN, LOG_STD_MAX)
    return jnp.tanh(mu + jnp.exp(log_std) * eps.reshape(-1, 1)) * 2.0


def init_params(key):
    """Deterministic init matching the PyTorch module's parameter shapes."""
    ks = jax.random.split(key, 8)

    def uniform_fan_in(k, shape, fan_in):
        bound = 1.0 / jnp.sqrt(fan_in)
        return jax.random.uniform(k, shape, jnp.float32, -bound, bound)

    w1 = uniform_fan_in(ks[0], (3, 64), 3)     # Linear(3, 64) stored in x out
    b1 = uniform_fan_in(ks[1], (64,), 3)
    w2 = uniform_fan_in(ks[2], (64, 64), 64)   # Linear(64, 64)
    b2 = uniform_fan_in(ks[3], (64,), 64)
    wmu = uniform_fan_in(ks[4], (64, 1), 64)   # mu head Linear(64, 1)
    bmu = uniform_fan_in(ks[5], (1,), 64)
    wls = uniform_fan_in(ks[6], (64, 1), 64)   # log_std head Linear(64, 1)
    bls = uniform_fan_in(ks[7], (1,), 64)
    return (w1, b1, w2, b2, wmu, bmu, wls, bls)


if __name__ == "__main__":
    key = jax.random.PRNGKey(0)
    k_params, k_obs, k_eps, k_obs2, k_eps2 = jax.random.split(key, 5)

    params = init_params(k_params)
    prepped = prepare_params(params)           # one-time weight prep (hoisted)

    # --- small example (B=8) ----------------------------------------------
    B = 8
    obs = jax.random.normal(k_obs, (B, 3), jnp.float32)
    eps = jax.random.normal(k_eps, (B, 1), jnp.float32)   # Normal.sample() noise
    act = simple_actor_forward(obs, prepped, eps)
    jax.block_until_ready(act)
    assert act.shape == (B, 1)
    assert bool(jnp.all(jnp.abs(act) <= 2.0))
    ref = reference_forward(obs, params, eps)
    assert bool(jnp.allclose(act, ref, atol=1e-1)), "mismatch vs f32 reference"

    # --- larger, non-multiple batch to exercise the grid + tail padding ----
    B2 = 2000
    obs2 = jax.random.normal(k_obs2, (B2, 3), jnp.float32)
    eps2 = jax.random.normal(k_eps2, (B2, 1), jnp.float32)
    act2 = simple_actor_forward(obs2, prepped, eps2, block_b=512)
    jax.block_until_ready(act2)
    assert act2.shape == (B2, 1)
    assert bool(jnp.all(jnp.abs(act2) <= 2.0))
    ref2 = reference_forward(obs2, params, eps2)
    assert bool(jnp.allclose(act2, ref2, atol=1e-1)), "mismatch vs f32 reference (tiled)"

    print("KERNEL_OK")
</pallas_src>

<mosaic_0001>
module attributes {stable_mosaic.version = 11 : i64} {
  func.func @actor_kernel(%arg0: i32, %arg1: memref<3x128xbf16, #tpu.memory_space<vmem>>, %arg2: memref<64x3xf32, #tpu.memory_space<vmem>>, %arg3: memref<64x1xf32, #tpu.memory_space<vmem>>, %arg4: memref<64x64xbf16, #tpu.memory_space<vmem>>, %arg5: memref<64x1xf32, #tpu.memory_space<vmem>>, %arg6: memref<2x64xbf16, #tpu.memory_space<vmem>>, %arg7: memref<2x1xf32, #tpu.memory_space<vmem>>, %arg8: memref<1x128xf32, #tpu.memory_space<vmem>>, %arg9: memref<1x128xf32, #tpu.memory_space<vmem>>) attributes {dimension_semantics = [#tpu.dimension_semantics<parallel>], iteration_bounds = array<i64: 1>, scalar_prefetch = 0 : i64, scratch_operands = 0 : i64, tpu.core_type = #tpu.core_type<tc>, window_params = [{transform_indices = @transform_0, window_bounds = array<i64: 3, 128>}, {pipeline_mode = #tpu.pipeline_mode<synchronous>, transform_indices = @transform_1, window_bounds = array<i64: 64, 3>}, {pipeline_mode = #tpu.pipeline_mode<synchronous>, transform_indices = @transform_2, window_bounds = array<i64: 64, 1>}, {pipeline_mode = #tpu.pipeline_mode<synchronous>, transform_indices = @transform_3, window_bounds = array<i64: 64, 64>}, {pipeline_mode = #tpu.pipeline_mode<synchronous>, transform_indices = @transform_4, window_bounds = array<i64: 64, 1>}, {pipeline_mode = #tpu.pipeline_mode<synchronous>, transform_indices = @transform_5, window_bounds = array<i64: 2, 64>}, {pipeline_mode = #tpu.pipeline_mode<synchronous>, transform_indices = @transform_6, window_bounds = array<i64: 2, 1>}, {transform_indices = @transform_7, window_bounds = array<i64: 1, 128>}, {transform_indices = @transform_8, window_bounds = array<i64: 1, 128>}]} {
    %c0 = arith.constant 0 : index
    %c0_0 = arith.constant 0 : index
    %0 = vector.load %arg1[%c0, %c0_0] : memref<3x128xbf16, #tpu.memory_space<vmem>>, vector<3x128xbf16>
    %1 = arith.extf %0 : vector<3x128xbf16> to vector<3x128xf32>
    %c0_1 = arith.constant 0 : index
    %c0_2 = arith.constant 0 : index
    %2 = vector.load %arg2[%c0_1, %c0_2] : memref<64x3xf32, #tpu.memory_space<vmem>>, vector<64x3xf32>
    %3 = vector.extract_strided_slice %2 {offsets = [0, 0], sizes = [64, 1], strides = [1, 1]} : vector<64x3xf32> to vector<64x1xf32>
    %4 = vector.extract_strided_slice %1 {offsets = [0, 0], sizes = [1, 128], strides = [1, 1]} : vector<3x128xf32> to vector<1x128xf32>
    %5 = vector.broadcast %3 : vector<64x1xf32> to vector<64x128xf32>
    %6 = vector.broadcast %4 : vector<1x128xf32> to vector<64x128xf32>
    %7 = arith.mulf %5, %6 : vector<64x128xf32>
    %8 = vector.extract_strided_slice %2 {offsets = [0, 1], sizes = [64, 1], strides = [1, 1]} : vector<64x3xf32> to vector<64x1xf32>
    %9 = vector.extract_strided_slice %1 {offsets = [1, 0], sizes = [1, 128], strides = [1, 1]} : vector<3x128xf32> to vector<1x128xf32>
    %10 = vector.broadcast %8 : vector<64x1xf32> to vector<64x128xf32>
    %11 = vector.broadcast %9 : vector<1x128xf32> to vector<64x128xf32>
    %12 = arith.mulf %10, %11 : vector<64x128xf32>
    %13 = arith.addf %7, %12 : vector<64x128xf32>
    %14 = vector.extract_strided_slice %2 {offsets = [0, 2], sizes = [64, 1], strides = [1, 1]} : vector<64x3xf32> to vector<64x1xf32>
    %15 = vector.extract_strided_slice %1 {offsets = [2, 0], sizes = [1, 128], strides = [1, 1]} : vector<3x128xf32> to vector<1x128xf32>
    %16 = vector.broadcast %14 : vector<64x1xf32> to vector<64x128xf32>
    %17 = vector.broadcast %15 : vector<1x128xf32> to vector<64x128xf32>
    %18 = arith.mulf %16, %17 : vector<64x128xf32>
    %19 = arith.addf %13, %18 : vector<64x128xf32>
    %c0_3 = arith.constant 0 : index
    %c0_4 = arith.constant 0 : index
    %20 = vector.load %arg3[%c0_3, %c0_4] : memref<64x1xf32, #tpu.memory_space<vmem>>, vector<64x1xf32>
    %21 = vector.broadcast %20 : vector<64x1xf32> to vector<64x128xf32>
    %22 = arith.addf %19, %21 : vector<64x128xf32>
    %cst = arith.constant 0.000000e+00 : f32
    %23 = vector.broadcast %cst : f32 to vector<64x128xf32>
    %24 = arith.maximumf %22, %23 : vector<64x128xf32>
    %c0_5 = arith.constant 0 : index
    %c0_6 = arith.constant 0 : index
    %25 = vector.load %arg4[%c0_5, %c0_6] : memref<64x64xbf16, #tpu.memory_space<vmem>>, vector<64x64xbf16>
    %26 = arith.truncf %24 : vector<64x128xf32> to vector<64x128xbf16>
    %cst_7 = arith.constant dense<0.000000e+00> : vector<64x128xf32>
    %27 = tpu.matmul %25, %26, %cst_7 {dimension_numbers = #tpu.dot_dimension_numbers<[1], [0], [0], [1], [0, 0, 1, 1], [], []>} : vector<64x64xbf16>, vector<64x128xbf16>, vector<64x128xf32> -> vector<64x128xf32>
    %c0_8 = arith.constant 0 : index
    %c0_9 = arith.constant 0 : index
    %28 = vector.load %arg5[%c0_8, %c0_9] : memref<64x1xf32, #tpu.memory_space<vmem>>, vector<64x1xf32>
    %29 = vector.broadcast %28 : vector<64x1xf32> to vector<64x128xf32>
    %30 = arith.addf %27, %29 : vector<64x128xf32>
    %cst_10 = arith.constant 0.000000e+00 : f32
    %31 = vector.broadcast %cst_10 : f32 to vector<64x128xf32>
    %32 = arith.maximumf %30, %31 : vector<64x128xf32>
    %c0_11 = arith.constant 0 : index
    %c0_12 = arith.constant 0 : index
    %33 = vector.load %arg6[%c0_11, %c0_12] : memref<2x64xbf16, #tpu.memory_space<vmem>>, vector<2x64xbf16>
    %34 = arith.truncf %32 : vector<64x128xf32> to vector<64x128xbf16>
    %cst_13 = arith.constant dense<0.000000e+00> : vector<2x128xf32>
    %35 = tpu.matmul %33, %34, %cst_13 {dimension_numbers = #tpu.dot_dimension_numbers<[1], [0], [0], [1], [0, 0, 1, 1], [], []>} : vector<2x64xbf16>, vector<64x128xbf16>, vector<2x128xf32> -> vector<2x128xf32>
    %c0_14 = arith.constant 0 : index
    %c0_15 = arith.constant 0 : index
    %36 = vector.load %arg7[%c0_14, %c0_15] : memref<2x1xf32, #tpu.memory_space<vmem>>, vector<2x1xf32>
    %37 = vector.broadcast %36 : vector<2x1xf32> to vector<2x128xf32>
    %38 = arith.addf %35, %37 : vector<2x128xf32>
    %39 = vector.extract_strided_slice %38 {offsets = [0, 0], sizes = [1, 128], strides = [1, 1]} : vector<2x128xf32> to vector<1x128xf32>
    %40 = vector.extract_strided_slice %38 {offsets = [1, 0], sizes = [1, 128], strides = [1, 1]} : vector<2x128xf32> to vector<1x128xf32>
    %cst_16 = arith.constant -2.000000e+01 : f32
    %cst_17 = arith.constant 2.000000e+00 : f32
    %41 = vector.broadcast %cst_16 : f32 to vector<1x128xf32>
    %42 = arith.maximumf %41, %40 : vector<1x128xf32>
    %43 = vector.broadcast %cst_17 : f32 to vector<1x128xf32>
    %44 = arith.minimumf %43, %42 : vector<1x128xf32>
    %45 = math.exp %44 : vector<1x128xf32>
    %c0_18 = arith.constant 0 : index
    %c0_19 = arith.constant 0 : index
    %46 = vector.load %arg8[%c0_18, %c0_19] : memref<1x128xf32, #tpu.memory_space<vmem>>, vector<1x128xf32>
    %47 = arith.mulf %45, %46 : vector<1x128xf32>
    %48 = arith.addf %39, %47 : vector<1x128xf32>
    %49 = math.tanh %48 : vector<1x128xf32>
    %cst_20 = arith.constant 2.000000e+00 : f32
    %50 = vector.broadcast %cst_20 : f32 to vector<1x128xf32>
    %51 = arith.mulf %49, %50 : vector<1x128xf32>
    %c0_21 = arith.constant 0 : index
    %c0_22 = arith.constant 0 : index
    %52 = vector.load %arg9[%c0_21, %c0_22] : memref<1x128xf32, #tpu.memory_space<vmem>>, vector<1x128xf32>
    tpu.vector_store %arg9[%c0_21, %c0_22], %51 {strides = array<i32>} : memref<1x128xf32, #tpu.memory_space<vmem>>, vector<1x128xf32>,
    return
  }
  func.func @transform_0(%arg0: i32) -> (i32, i32) {
    %c0_i32 = arith.constant 0 : i32
    %c0_i32_0 = arith.constant 0 : i32
    return %c0_i32, %arg0 : i32, i32
  }
  func.func @transform_1(%arg0: i32) -> (i32, i32) {
    %c0_i32 = arith.constant 0 : i32
    %c0_i32_0 = arith.constant 0 : i32
    %c0_i32_1 = arith.constant 0 : i32
    return %c0_i32, %c0_i32_0 : i32, i32
  }
  func.func @transform_2(%arg0: i32) -> (i32, i32) {
    %c0_i32 = arith.constant 0 : i32
    %c0_i32_0 = arith.constant 0 : i32
    %c0_i32_1 = arith.constant 0 : i32
    return %c0_i32, %c0_i32_0 : i32, i32
  }
  func.func @transform_3(%arg0: i32) -> (i32, i32) {
    %c0_i32 = arith.constant 0 : i32
    %c0_i32_0 = arith.constant 0 : i32
    %c0_i32_1 = arith.constant 0 : i32
    return %c0_i32, %c0_i32_0 : i32, i32
  }
  func.func @transform_4(%arg0: i32) -> (i32, i32) {
    %c0_i32 = arith.constant 0 : i32
    %c0_i32_0 = arith.constant 0 : i32
    %c0_i32_1 = arith.constant 0 : i32
    return %c0_i32, %c0_i32_0 : i32, i32
  }
  func.func @transform_5(%arg0: i32) -> (i32, i32) {
    %c0_i32 = arith.constant 0 : i32
    %c0_i32_0 = arith.constant 0 : i32
    %c0_i32_1 = arith.constant 0 : i32
    return %c0_i32, %c0_i32_0 : i32, i32
  }
  func.func @transform_6(%arg0: i32) -> (i32, i32) {
    %c0_i32 = arith.constant 0 : i32
    %c0_i32_0 = arith.constant 0 : i32
    %c0_i32_1 = arith.constant 0 : i32
    return %c0_i32, %c0_i32_0 : i32, i32
  }
  func.func @transform_7(%arg0: i32) -> (i32, i32) {
    %c0_i32 = arith.constant 0 : i32
    %c0_i32_0 = arith.constant 0 : i32
    return %c0_i32, %arg0 : i32, i32
  }
  func.func @transform_8(%arg0: i32) -> (i32, i32) {
    %c0_i32 = arith.constant 0 : i32
    %c0_i32_0 = arith.constant 0 : i32
    return %c0_i32, %arg0 : i32, i32
  }
}

</mosaic_0001>

<llo_original>
// kernel: simple_actor_forward.1
$region0: #{simple_actor_forward.1}
  #allocation0 [shape = 'u32[]', space=smem, size = 0x4, offset = 0x4, fixed_abs, tag = 'smem constant byte address 0x4 - core index']
  #allocation1 [shape = 'u32[72,128]{1,0:T(1,128)}', space=vmem, size = 0x9000, scoped, tag = 'internal scratch']
  %s0 = inlined_call_operand.vmem [shape: bf16[3,128], index: 0, kind: input, shape index: {}]
  %s1 = inlined_call_operand.vmem [shape: f32[64,3], index: 1, kind: input, shape index: {}]
  %s2 = inlined_call_operand.vmem [shape: f32[64,1], index: 2, kind: input, shape index: {}]
  %s3 = inlined_call_operand.vmem [shape: bf16[64,64], index: 3, kind: input, shape index: {}]
  %s4 = inlined_call_operand.vmem [shape: f32[64,1], index: 4, kind: input, shape index: {}]
  %s5 = inlined_call_operand.vmem [shape: bf16[2,64], index: 5, kind: input, shape index: {}]
  %s6 = inlined_call_operand.vmem [shape: f32[2,1], index: 6, kind: input, shape index: {}]
  %s7 = inlined_call_operand.vmem [shape: f32[1,128], index: 7, kind: input, shape index: {}]
  %s8 = inlined_call_operand.vmem [shape: f32[1,128], index: 8, kind: output, shape index: {}]
  %s9 = sld [smem:[#allocation0]]
  $region42: #{simple_actor_forward.1} parent=0
    _
  %s11 = ssub.s32 1, %s9
  %s12 = scalar_select 0, %s11, %s9
  // Predicated region
  $region2: #{simple_actor_forward.1} parent=0 // pred_check
    _
  $region3: #{simple_actor_forward.1} parent=0 // pred_check_branch
    %14 = sbr.rel (0) target = $region5
  $region4: #{simple_actor_forward.1} parent=0 // pred_region
    _
  $region5: #{simple_actor_forward.1} parent=0 // pred_fallthru
    _
  // Predicated region
  $region6: #{simple_actor_forward.1} parent=0 // pred_check
    _
  $region7: #{simple_actor_forward.1} parent=0 // pred_check_branch
    %16 = sbr.rel (0) target = $region9
  $region8: #{simple_actor_forward.1} parent=0 // pred_region
    _
  $region9: #{simple_actor_forward.1} parent=0 // pred_fallthru
    _
  // Predicated region
  $region10: #{simple_actor_forward.1} parent=0 // pred_check
    _
  $region11: #{simple_actor_forward.1} parent=0 // pred_check_branch
    %18 = sbr.rel (0) target = $region13
  $region12: #{simple_actor_forward.1} parent=0 // pred_region
    _
  $region13: #{simple_actor_forward.1} parent=0 // pred_fallthru
    _
  // Predicated region
  $region14: #{simple_actor_forward.1} parent=0 // pred_check
    _
  $region15: #{simple_actor_forward.1} parent=0 // pred_check_branch
    %20 = sbr.rel (0) target = $region17
  $region16: #{simple_actor_forward.1} parent=0 // pred_region
    _
  $region17: #{simple_actor_forward.1} parent=0 // pred_fallthru
    _
  // Predicated region
  $region18: #{simple_actor_forward.1} parent=0 // pred_check
    _
  $region19: #{simple_actor_forward.1} parent=0 // pred_check_branch
    %22 = sbr.rel (0) target = $region21
  $region20: #{simple_actor_forward.1} parent=0 // pred_region
    _
  $region21: #{simple_actor_forward.1} parent=0 // pred_fallthru
    _
  // Predicated region
  $region22: #{simple_actor_forward.1} parent=0 // pred_check
    _
  $region23: #{simple_actor_forward.1} parent=0 // pred_check_branch
    %24 = sbr.rel (0) target = $region25
  $region24: #{simple_actor_forward.1} parent=0 // pred_region
    _
  $region25: #{simple_actor_forward.1} parent=0 // pred_fallthru
    _
  // Predicated region
  $region26: #{simple_actor_forward.1} parent=0 // pred_check
    _
  $region27: #{simple_actor_forward.1} parent=0 // pred_check_branch
    %26 = sbr.rel (0) target = $region29
  $region28: #{simple_actor_forward.1} parent=0 // pred_region
    _
  $region29: #{simple_actor_forward.1} parent=0 // pred_fallthru
    _
  // Predicated region
  $region30: #{simple_actor_forward.1} parent=0 // pred_check
    _
  $region31: #{simple_actor_forward.1} parent=0 // pred_check_branch
    %28 = sbr.rel (0) target = $region33
  $region32: #{simple_actor_forward.1} parent=0 // pred_region
    _
  $region33: #{simple_actor_forward.1} parent=0 // pred_fallthru
    _
  %v30 = vld [vmem:[%s0] sm:$0x3]
  %v31 = vunpack.c.l.bf16 %v30
  %v32 = vld [vmem:[%s1] sm:$0xff]
  %v33 = vld [vmem:[%s1 + $0x8] sm:$0xff]
  %v34 = vld [vmem:[%s1 + $0x10] sm:$0xff]
  %v35 = vld [vmem:[%s1 + $0x18] sm:$0xff]
  %v36 = vld [vmem:[%s1 + $0x20] sm:$0xff]
  %v37 = vld [vmem:[%s1 + $0x28] sm:$0xff]
  %v38 = vld [vmem:[%s1 + $0x30] sm:$0xff]
  %v39 = vld [vmem:[%s1 + $0x38] sm:$0xff]
  %41 = vset.pattern.permute.xlu0 0
  %42 = vperm.xlu0 %41, %v32
  %v43 = vpop.permute.xlu0 %42
  %46 = vset.pattern.permute.xlu0 0
  %47 = vperm.xlu0 %46, %v33
  %v48 = vpop.permute.xlu0 %47
  %51 = vset.pattern.permute.xlu0 0
  %52 = vperm.xlu0 %51, %v34
  %v53 = vpop.permute.xlu0 %52
  %56 = vset.pattern.permute.xlu0 0
  %57 = vperm.xlu0 %56, %v35
  %v58 = vpop.permute.xlu0 %57
  %61 = vset.pattern.permute.xlu0 0
  %62 = vperm.xlu0 %61, %v36
  %v63 = vpop.permute.xlu0 %62
  %66 = vset.pattern.permute.xlu0 0
  %67 = vperm.xlu0 %66, %v37
  %v68 = vpop.permute.xlu0 %67
  %71 = vset.pattern.permute.xlu0 0
  %72 = vperm.xlu0 %71, %v38
  %v73 = vpop.permute.xlu0 %72
  %76 = vset.pattern.permute.xlu0 0
  %77 = vperm.xlu0 %76, %v39
  %v78 = vpop.permute.xlu0 %77
  %v80 = vperm.slane %v31, 0
  %v81 = vmul.f32 %v43, %v80
  %v82 = vmul.f32 %v48, %v80
  %v83 = vmul.f32 %v53, %v80
  %v84 = vmul.f32 %v58, %v80
  %v85 = vmul.f32 %v63, %v80
  %v86 = vmul.f32 %v68, %v80
  %v87 = vmul.f32 %v73, %v80
  %v88 = vmul.f32 %v78, %v80
  %89 = vset.pattern.permute.xlu0 1
  %90 = vperm.xlu0 %89, %v32
  %v91 = vpop.permute.xlu0 %90
  %93 = vset.pattern.permute.xlu0 1
  %94 = vperm.xlu0 %93, %v33
  %v95 = vpop.permute.xlu0 %94
  %97 = vset.pattern.permute.xlu0 1
  %98 = vperm.xlu0 %97, %v34
  %v99 = vpop.permute.xlu0 %98
  %101 = vset.pattern.permute.xlu0 1
  %102 = vperm.xlu0 %101, %v35
  %v103 = vpop.permute.xlu0 %102
  %105 = vset.pattern.permute.xlu0 1
  %106 = vperm.xlu0 %105, %v36
  %v107 = vpop.permute.xlu0 %106
  %109 = vset.pattern.permute.xlu0 1
  %110 = vperm.xlu0 %109, %v37
  %v111 = vpop.permute.xlu0 %110
  %113 = vset.pattern.permute.xlu0 1
  %114 = vperm.xlu0 %113, %v38
  %v115 = vpop.permute.xlu0 %114
  %117 = vset.pattern.permute.xlu0 1
  %118 = vperm.xlu0 %117, %v39
  %v119 = vpop.permute.xlu0 %118
  %v121 = vperm.slane %v31, 1
  %v122 = vmul.f32 %v91, %v121
  %v123 = vmul.f32 %v95, %v121
  %v124 = vmul.f32 %v99, %v121
  %v125 = vmul.f32 %v103, %v121
  %v126 = vmul.f32 %v107, %v121
  %v127 = vmul.f32 %v111, %v121
  %v128 = vmul.f32 %v115, %v121
  %v129 = vmul.f32 %v119, %v121
  %v130 = vadd.f32 %v81, %v122
  %v131 = vadd.f32 %v82, %v123
  %v132 = vadd.f32 %v83, %v124
  %v133 = vadd.f32 %v84, %v125
  %v134 = vadd.f32 %v85, %v126
  %v135 = vadd.f32 %v86, %v127
  %v136 = vadd.f32 %v87, %v128
  %v137 = vadd.f32 %v88, %v129
  %138 = vset.pattern.permute.xlu0 2
  %139 = vperm.xlu0 %138, %v32
  %v140 = vpop.permute.xlu0 %139
  %142 = vset.pattern.permute.xlu0 2
  %143 = vperm.xlu0 %142, %v33
  %v144 = vpop.permute.xlu0 %143
  %146 = vset.pattern.permute.xlu0 2
  %147 = vperm.xlu0 %146, %v34
  %v148 = vpop.permute.xlu0 %147
  %150 = vset.pattern.permute.xlu0 2
  %151 = vperm.xlu0 %150, %v35
  %v152 = vpop.permute.xlu0 %151
  %154 = vset.pattern.permute.xlu0 2
  %155 = vperm.xlu0 %154, %v36
  %v156 = vpop.permute.xlu0 %155
  %158 = vset.pattern.permute.xlu0 2
  %159 = vperm.xlu0 %158, %v37
  %v160 = vpop.permute.xlu0 %159
  %162 = vset.pattern.permute.xlu0 2
  %163 = vperm.xlu0 %162, %v38
  %v164 = vpop.permute.xlu0 %163
  %166 = vset.pattern.permute.xlu0 2
  %167 = vperm.xlu0 %166, %v39
  %v168 = vpop.permute.xlu0 %167
  %v170 = vperm.slane %v31, 2
  %v171 = vmul.f32 %v140, %v170
  %v172 = vmul.f32 %v144, %v170
  %v173 = vmul.f32 %v148, %v170
  %v174 = vmul.f32 %v152, %v170
  %v175 = vmul.f32 %v156, %v170
  %v176 = vmul.f32 %v160, %v170
  %v177 = vmul.f32 %v164, %v170
  %v178 = vmul.f32 %v168, %v170
  %v179 = vadd.f32 %v130, %v171
  %v180 = vadd.f32 %v131, %v172
  %v181 = vadd.f32 %v132, %v173
  %v182 = vadd.f32 %v133, %v174
  %v183 = vadd.f32 %v134, %v175
  %v184 = vadd.f32 %v135, %v176
  %v185 = vadd.f32 %v136, %v177
  %v186 = vadd.f32 %v137, %v178
  %v187 = vld [vmem:[%s2] sm:$0xff]
  %v188 = vld [vmem:[%s2 + $0x8] sm:$0xff]
  %v189 = vld [vmem:[%s2 + $0x10] sm:$0xff]
  %v190 = vld [vmem:[%s2 + $0x18] sm:$0xff]
  %v191 = vld [vmem:[%s2 + $0x20] sm:$0xff]
  %v192 = vld [vmem:[%s2 + $0x28] sm:$0xff]
  %v193 = vld [vmem:[%s2 + $0x30] sm:$0xff]
  %v194 = vld [vmem:[%s2 + $0x38] sm:$0xff]
  %196 = vset.pattern.permute.xlu0 0
  %197 = vperm.xlu0 %196, %v187
  %v198 = vpop.permute.xlu0 %197
  %201 = vset.pattern.permute.xlu0 0
  %202 = vperm.xlu0 %201, %v188
  %v203 = vpop.permute.xlu0 %202
  %206 = vset.pattern.permute.xlu0 0
  %207 = vperm.xlu0 %206, %v189
  %v208 = vpop.permute.xlu0 %207
  %211 = vset.pattern.permute.xlu0 0
  %212 = vperm.xlu0 %211, %v190
  %v213 = vpop.permute.xlu0 %212
  %216 = vset.pattern.permute.xlu0 0
  %217 = vperm.xlu0 %216, %v191
  %v218 = vpop.permute.xlu0 %217
  %221 = vset.pattern.permute.xlu0 0
  %222 = vperm.xlu0 %221, %v192
  %v223 = vpop.permute.xlu0 %222
  %226 = vset.pattern.permute.xlu0 0
  %227 = vperm.xlu0 %226, %v193
  %v228 = vpop.permute.xlu0 %227
  %231 = vset.pattern.permute.xlu0 0
  %232 = vperm.xlu0 %231, %v194
  %v233 = vpop.permute.xlu0 %232
  %v235 = vadd.f32 %v179, %v198
  %v236 = vadd.f32 %v180, %v203
  %v237 = vadd.f32 %v181, %v208
  %v238 = vadd.f32 %v182, %v213
  %v239 = vadd.f32 %v183, %v218
  %v240 = vadd.f32 %v184, %v223
  %v241 = vadd.f32 %v185, %v228
  %v242 = vadd.f32 %v186, %v233
  %v243 = vmax.f32 %v235, 0.0
  %v244 = vmax.f32 %v236, 0.0
  %v245 = vmax.f32 %v237, 0.0
  %v246 = vmax.f32 %v238, 0.0
  %v247 = vmax.f32 %v239, 0.0
  %v248 = vmax.f32 %v240, 0.0
  %v249 = vmax.f32 %v241, 0.0
  %v250 = vmax.f32 %v242, 0.0
  %v251 = vld [vmem:[%s3] sm:$0xf]
  %v252 = vld [vmem:[%s3 + $0x4] sm:$0xf]
  %v253 = vld [vmem:[%s3 + $0x8] sm:$0xf]
  %v254 = vld [vmem:[%s3 + $0xc] sm:$0xf]
  %v255 = vld [vmem:[%s3 + $0x10] sm:$0xf]
  %v256 = vld [vmem:[%s3 + $0x14] sm:$0xf]
  %v257 = vld [vmem:[%s3 + $0x18] sm:$0xf]
  %v258 = vld [vmem:[%s3 + $0x1c] sm:$0xf]
  %v259 = vpack.c.bf16 %v244, %v243
  %v260 = vpack.c.bf16 %v246, %v245
  %v261 = vpack.c.bf16 %v248, %v247
  %v262 = vpack.c.bf16 %v250, %v249
  %v263 = vld [vmem:[%s4] sm:$0xff]
  %v264 = vld [vmem:[%s4 + $0x8] sm:$0xff]
  %v265 = vld [vmem:[%s4 + $0x10] sm:$0xff]
  %v266 = vld [vmem:[%s4 + $0x18] sm:$0xff]
  %v267 = vld [vmem:[%s4 + $0x20] sm:$0xff]
  %v268 = vld [vmem:[%s4 + $0x28] sm:$0xff]
  %v269 = vld [vmem:[%s4 + $0x30] sm:$0xff]
  %v270 = vld [vmem:[%s4 + $0x38] sm:$0xff]
  %272 = vset.pattern.permute.xlu0 0
  %273 = vperm.xlu0 %272, %v263
  %v274 = vpop.permute.xlu0 %273
  %277 = vset.pattern.permute.xlu0 0
  %278 = vperm.xlu0 %277, %v264
  %v279 = vpop.permute.xlu0 %278
  %282 = vset.pattern.permute.xlu0 0
  %283 = vperm.xlu0 %282, %v265
  %v284 = vpop.permute.xlu0 %283
  %287 = vset.pattern.permute.xlu0 0
  %288 = vperm.xlu0 %287, %v266
  %v289 = vpop.permute.xlu0 %288
  %292 = vset.pattern.permute.xlu0 0
  %293 = vperm.xlu0 %292, %v267
  %v294 = vpop.permute.xlu0 %293
  %297 = vset.pattern.permute.xlu0 0
  %298 = vperm.xlu0 %297, %v268
  %v299 = vpop.permute.xlu0 %298
  %302 = vset.pattern.permute.xlu0 0
  %303 = vperm.xlu0 %302, %v269
  %v304 = vpop.permute.xlu0 %303
  %307 = vset.pattern.permute.xlu0 0
  %308 = vperm.xlu0 %307, %v270
  %v309 = vpop.permute.xlu0 %308
  %v319 = vunpack.c.l.b16 %v251
  %v320 = vunpack.c.l.b16 %v252
  %v321 = vunpack.c.l.b16 %v253
  %v322 = vunpack.c.l.b16 %v254
  %v323 = vunpack.c.l.b16 %v255
  %v324 = vunpack.c.l.b16 %v256
  %v325 = vunpack.c.l.b16 %v257
  %v326 = vunpack.c.l.b16 %v258
  %v327 = vpack.c.b16 %v320, %v319
  %v328 = vpack.c.b16 %v322, %v321
  %v329 = vpack.c.b16 %v324, %v323
  %v330 = vpack.c.b16 %v326, %v325
  %vm331 = vcmask 523264
  %v333 = vsel %vm331, %v327, 0
  %v336 = vsel %vm331, %v328, 0
  %v339 = vsel %vm331, %v329, 0
  %v342 = vsel %vm331, %v330, 0
  %344 = vmatpush.bf16.msra.mxu0 0
  %345 = vmatpush.bf16.msra.mxu0 0
  %346 = vmatpush.bf16.msra.mxu0 0
  %347 = vmatpush.bf16.msra.mxu0 0
  %348 = vmatpush.bf16.msra.mxu0 %v262
  %349 = vmatpush.bf16.msra.mxu0 %v261
  %350 = vmatpush.bf16.msra.mxu0 %v260
  %351 = vmatpush.bf16.msra.mxu0 %v259
  %352 = vmatmul.bf16.gmra.mxu0 %v333
  %v353 = vpop.f32.mrf.mxu0
  %v354 = vadd.f32 %v274, %v353
  %v355 = vpop.f32.mrf.mxu0
  %v356 = vadd.f32 %v279, %v355
  %357 = vmatmul.bf16.gmra.mxu0 %v336
  %v358 = vpop.f32.mrf.mxu0
  %v359 = vadd.f32 %v284, %v358
  %v360 = vpop.f32.mrf.mxu0
  %v361 = vadd.f32 %v289, %v360
  %362 = vmatmul.bf16.gmra.mxu0 %v339
  %v363 = vpop.f32.mrf.mxu0
  %v364 = vadd.f32 %v294, %v363
  %v365 = vpop.f32.mrf.mxu0
  %v366 = vadd.f32 %v299, %v365
  %367 = vmatmul.bf16.gmra.mxu0 %v342
  %v368 = vpop.f32.mrf.mxu0
  %v369 = vadd.f32 %v304, %v368
  %v370 = vpop.f32.mrf.mxu0
  %v371 = vadd.f32 %v309, %v370
  %372 = vdwg.mxu0
  %v373 = vmax.f32 %v354, 0.0
  %v374 = vmax.f32 %v356, 0.0
  %v375 = vmax.f32 %v359, 0.0
  %v376 = vmax.f32 %v361, 0.0
  %v377 = vmax.f32 %v364, 0.0
  %v378 = vmax.f32 %v366, 0.0
  %v379 = vmax.f32 %v369, 0.0
  %v380 = vmax.f32 %v371, 0.0
  %v381 = vld [vmem:[%s5] sm:$0x1]
  %v382 = vpack.c.bf16 %v374, %v373
  %v383 = vpack.c.bf16 %v376, %v375
  %v384 = vpack.c.bf16 %v378, %v377
  %v385 = vpack.c.bf16 %v380, %v379
  %v386 = vld [vmem:[%s6] sm:$0x3]
  %388 = vset.pattern.permute.xlu0 0
  %389 = vperm.xlu0 %388, %v386
  %v390 = vpop.permute.xlu0 %389
  %v393 = vsel %vm331, %v381, 0
  %395 = vmatpush.bf16.msra.mxu0 0
  %396 = vmatpush.bf16.msra.mxu0 0
  %397 = vmatpush.bf16.msra.mxu0 0
  %398 = vmatpush.bf16.msra.mxu0 0
  %399 = vmatpush.bf16.msra.mxu0 %v385
  %400 = vmatpush.bf16.msra.mxu0 %v384
  %401 = vmatpush.bf16.msra.mxu0 %v383
  %402 = vmatpush.bf16.msra.mxu0 %v382
  %403 = vmatmul.bf16.gmra.mxu0 %v393
  %v404 = vpop.f32.mrf.mxu0
  %v405 = vadd.f32 %v390, %v404
  %v406 = vpop.f32.mrf.mxu0
  %407 = vdwg.mxu0
  %v408 = vmax.f32 %v405, -20.0
  %v409 = vmin.f32 %v408, 2.0
  %v410 = vmul.f32 %v409, 1.442695
  %v411 = vpow.pop %v410
  %v412 = vld [vmem:[%s7] sm:$0x1]
  %v414 = vperm.slane %v412, 0
  %v416 = vmul.f32 %v411, %v414
  %v418 = vrot.slane %v416, 1
  %v420 = vadd.f32 %v405, %v418
  %v421 = vtanh.pop %v420
  %v422 = vmul.f32 %v421, 2.0
  %423 = vst [vmem:[%s8] sm:$0x1] %v422
  // Predicated region
  $region34: #{simple_actor_forward.1} parent=0 // pred_check
    _
  $region35: #{simple_actor_forward.1} parent=0 // pred_check_branch
    %425 = sbr.rel (0) target = $region37
  $region36: #{simple_actor_forward.1} parent=0 // pred_region
    _
  $region37: #{simple_actor_forward.1} parent=0 // pred_fallthru
    _
  // Predicated region
  $region38: #{simple_actor_forward.1} parent=0 // pred_check
    _
  $region39: #{simple_actor_forward.1} parent=0 // pred_check_branch
    %427 = sbr.rel (0) target = $region41
  $region40: #{simple_actor_forward.1} parent=0 // pred_region
    _
  $region41: #{simple_actor_forward.1} parent=0 // pred_fallthru
    _

</llo_original>
